<compile_context>
chip_gen: v7x
topology: tpu7x:2x2x1
jax: 0.10.0
libtpu: 0.0.40
codegen_flags: <defaults>
</compile_context>

<pallas_src>
import functools
import math

import numpy as np
import jax
import jax.numpy as jnp
from jax.experimental import pallas as pl
from jax.experimental.pallas import tpu as pltpu

_NEG = -1e30  # "minus infinity" fill for vocab/time padding (never wins max, exp -> 0)


# ----------------------------------------------------------------------------
# Fused kernel
#   x_ref:   (L, Vmax, tB, tT)  stacked per-language logits, time on lanes
#   w1/b1/w2/b2: MLP head parameters (resident VMEM blocks)
#   res_ref, disc_ref: (tB, classes) outputs, written only in the T-epilogue
#   sum_acc, cnt_acc:  (tB, classes) f32 scratch accumulators across T tiles
# ----------------------------------------------------------------------------
def _fused_kernel(x_ref, w1_ref, b1_ref, w2_ref, b2_ref,
                  res_ref, disc_ref, sum_acc, cnt_acc,
                  *, lang_meta, t_valid):
    t_idx = pl.program_id(1)
    n_t = pl.num_programs(1)
    t_b = x_ref.shape[2]
    t_tile = x_ref.shape[3]

    @pl.when(t_idx == 0)
    def _init():
        sum_acc[...] = jnp.zeros_like(sum_acc)
        cnt_acc[...] = jnp.zeros_like(cnt_acc)

    # validity of this tile's time columns (T may be padded up to a tile multiple)
    t_global = jax.lax.broadcasted_iota(jnp.int32, (t_b, t_tile), 1) + t_idx * t_tile
    valid = t_global < t_valid

    # unrolled loop over languages (all statics baked in)
    for l, (class_idx, v_len, target_idx, _logv) in enumerate(lang_meta):
        # pass 1: running max + first-occurrence argmax over the real vocab rows
        m = x_ref[l, 0]                                   # (tB, tT)
        am = jnp.zeros(m.shape, jnp.int32)
        for v in range(1, v_len):
            xv = x_ref[l, v]
            upd = xv > m
            m = jnp.where(upd, xv, m)
            am = jnp.where(upd, v, am)
        # pass 2: logsumexp denominator; max(log_softmax) == -log(sum_j exp(x_j - max))
        s = jnp.exp(x_ref[l, 0] - m)
        for v in range(1, v_len):
            s = s + jnp.exp(x_ref[l, v] - m)
        max_logsm = -jnp.log(s)                           # (tB, tT)

        mask = (am != target_idx) & valid
        sum_col = jnp.sum(jnp.where(mask, max_logsm, 0.0), axis=-1, keepdims=True)
        cnt_col = jnp.sum(mask.astype(jnp.float32), axis=-1, keepdims=True)

        ci = class_idx
        sum_acc[:, ci:ci + 1] = sum_acc[:, ci:ci + 1] + sum_col
        cnt_acc[:, ci:ci + 1] = cnt_acc[:, ci:ci + 1] + cnt_col

    @pl.when(t_idx == n_t - 1)
    def _finalize():
        # assemble res (classes with no language stay 0, matching the reference)
        res_ref[...] = jnp.zeros_like(res_ref)
        for (class_idx, _v, _t, logv) in lang_meta:
            ci = class_idx
            denom = cnt_acc[:, ci:ci + 1] * logv + 1e-5
            res_ref[:, ci:ci + 1] = sum_acc[:, ci:ci + 1] * pl.reciprocal(denom, approx=True)
        res = res_ref[...]
        # fused MLP head: Linear(C,H) -> ReLU -> Linear(H,C)
        h = jnp.dot(res, w1_ref[...], preferred_element_type=jnp.float32) + b1_ref[...]
        h = jnp.maximum(h, 0.0)
        o = jnp.dot(h, w2_ref[...], preferred_element_type=jnp.float32) + b2_ref[...]
        disc_ref[...] = o.astype(disc_ref.dtype)


# ----------------------------------------------------------------------------
# Module wrapper
# ----------------------------------------------------------------------------
class LangDiscriminatorPallas:
    def __init__(self, lang2vocab, lang2index, hidden_dim=128, key=None):
        self.lang2vocab = dict(lang2vocab)
        self.lang2index = dict(lang2index)
        self.classes = len(self.lang2vocab)
        self.hidden_dim = hidden_dim
        if key is None:
            key = jax.random.PRNGKey(0)
        k1, k2, k3, k4 = jax.random.split(key, 4)
        c, h = self.classes, hidden_dim
        # PyTorch nn.Linear default init: U(-1/sqrt(fan_in), 1/sqrt(fan_in))
        b1_bound = 1.0 / math.sqrt(c)
        b2_bound = 1.0 / math.sqrt(h)
        self.w1 = jax.random.uniform(k1, (c, h), jnp.float32, -b1_bound, b1_bound)
        self.b1 = jax.random.uniform(k2, (1, h), jnp.float32, -b1_bound, b1_bound)
        self.w2 = jax.random.uniform(k3, (h, c), jnp.float32, -b2_bound, b2_bound)
        self.b2 = jax.random.uniform(k4, (1, c), jnp.float32, -b2_bound, b2_bound)
        # TODO(synk): torchmetrics.Accuracy / CrossEntropyLoss are training-only members,
        # never used in forward(); not translated.

    def __call__(self, x):
        langs = list(x.keys())
        first = x[langs[0]]
        B, T = int(first.shape[0]), int(first.shape[1])
        C, H = self.classes, self.hidden_dim
        L = len(langs)

        v_sizes = [int(x[l].shape[-1]) for l in langs]
        v_max = max(v_sizes)

        # ---- tile choice --------------------------------------------------
        # time tile: <=512 lanes => double-buffered input block stays a few hundred KiB,
        # well under v5e's 16 MiB scoped and v7x's 64 MiB physical VMEM.
        t_tile = T if T <= 512 else 512
        t_pad = ((T + t_tile - 1) // t_tile) * t_tile
        n_t = t_pad // t_tile
        # batch tile: leading "parallel" grid axis (v7x megacore). For small B it is a
        # single full block (satisfies the (8,128) rule because it equals the full dim).
        t_b = 8 if (B % 8 == 0) else B
        n_b = B // t_b

        # ---- layout plumbing: (B,T,V) -> (L, Vmax, B, Tpad), time on lanes ----
        stacked = jnp.full((L, v_max, B, t_pad), _NEG, dtype=jnp.float32)
        lang_meta = []
        for i, lang in enumerate(langs):
            xl = jnp.transpose(x[lang].astype(jnp.float32), (2, 0, 1))   # (V_l, B, T)
            stacked = stacked.at[i, :v_sizes[i], :, :T].set(xl)
            lang_meta.append((int(self.lang2index[lang]), v_sizes[i],
                              int(self.lang2vocab[lang]),
                              float(math.log(self.lang2vocab[lang]))))
        lang_meta = tuple(lang_meta)

        kernel = functools.partial(_fused_kernel, lang_meta=lang_meta, t_valid=T)

        res, disc = pl.pallas_call(
            kernel,
            out_shape=(jax.ShapeDtypeStruct((B, C), jnp.float32),
                       jax.ShapeDtypeStruct((B, C), jnp.float32)),
            grid_spec=pltpu.PrefetchScalarGridSpec(
                num_scalar_prefetch=0,
                grid=(n_b, n_t),
                in_specs=[
                    pl.BlockSpec((L, v_max, t_b, t_tile), lambda b, t: (0, 0, b, t)),
                    pl.BlockSpec((C, H), lambda b, t: (0, 0)),
                    pl.BlockSpec((1, H), lambda b, t: (0, 0)),
                    pl.BlockSpec((H, C), lambda b, t: (0, 0)),
                    pl.BlockSpec((1, C), lambda b, t: (0, 0)),
                ],
                out_specs=[
                    pl.BlockSpec((t_b, C), lambda b, t: (b, 0)),
                    pl.BlockSpec((t_b, C), lambda b, t: (b, 0)),
                ],
                scratch_shapes=[pltpu.VMEM((t_b, C), jnp.float32),
                                pltpu.VMEM((t_b, C), jnp.float32)],
            ),
            compiler_params=pltpu.CompilerParams(
                dimension_semantics=("parallel", "arbitrary")),
        )(stacked, self.w1, self.b1, self.w2, self.b2)
        return res, disc


# ----------------------------------------------------------------------------
# Pure-JAX reference (true module semantics) for correctness check
# ----------------------------------------------------------------------------
def _reference(x, model):
    langs = list(x.keys())
    B = x[langs[0]].shape[0]
    res = np.zeros((B, model.classes), np.float32)
    for lang in langs:
        lsm = jax.nn.log_softmax(x[lang].astype(jnp.float32), axis=-1)
        mv = jnp.max(lsm, axis=-1)
        am = jnp.argmax(lsm, axis=-1)
        mask = (am - model.lang2vocab[lang]) != 0
        ln = jnp.sum(mask, axis=-1)
        conf = jnp.sum(jnp.where(mask, mv, 0.0), axis=-1) / (
            ln * np.log(model.lang2vocab[lang]) + 1e-5)
        res[:, model.lang2index[lang]] = np.asarray(conf)
    res = jnp.asarray(res)
    h = jnp.maximum(res @ model.w1 + model.b1, 0.0)
    out = h @ model.w2 + model.b2
    return res, out


if __name__ == "__main__":
    key = jax.random.PRNGKey(0)
    kp, k_en, k_zh, k_en2, k_zh2 = jax.random.split(key, 5)

    lang2vocab = {"en": 7, "zh": 11}   # vocab sizes; logits carry one extra (blank) index
    lang2index = {"en": 0, "zh": 1}
    model = LangDiscriminatorPallas(lang2vocab, lang2index, hidden_dim=32, key=kp)

    def check(x):
        res, disc = model(x)
        res = jax.block_until_ready(res)
        disc = jax.block_until_ready(disc)
        res_ref, disc_ref = _reference(x, model)
        # tolerance accounts for the EUP approximate reciprocal (~2^-12 relative)
        assert np.allclose(np.asarray(res), np.asarray(res_ref), rtol=5e-3, atol=1e-3), "res mismatch"
        assert np.allclose(np.asarray(disc), np.asarray(disc_ref), rtol=5e-3, atol=1e-3), "mlp mismatch"

    # case 1: tiny single-T-tile case
    B, T = 2, 8
    x_small = {
        "en": jax.random.normal(k_en, (B, T, lang2vocab["en"] + 1), jnp.float32),
        "zh": jax.random.normal(k_zh, (B, T, lang2vocab["zh"] + 1), jnp.float32),
    }
    check(x_small)

    # case 2: multi-T-tile case (exercises T grid, scratch accumulation and time padding mask)
    B, T = 2, 1200
    x_big = {
        "en": jax.random.normal(k_en2, (B, T, lang2vocab["en"] + 1), jnp.float32),
        "zh": jax.random.normal(k_zh2, (B, T, lang2vocab["zh"] + 1), jnp.float32),
    }
    check(x_big)

    print("KERNEL_OK")
</pallas_src>

<mosaic_0001>
module attributes {stable_mosaic.version = 11 : i64} {
  func.func @_fused_kernel(%arg0: i32, %arg1: i32, %arg2: memref<2x12x2x8xf32, #tpu.memory_space<vmem>>, %arg3: memref<2x32xf32, #tpu.memory_space<vmem>>, %arg4: memref<1x32xf32, #tpu.memory_space<vmem>>, %arg5: memref<32x2xf32, #tpu.memory_space<vmem>>, %arg6: memref<1x2xf32, #tpu.memory_space<vmem>>, %arg7: memref<2x2xf32, #tpu.memory_space<vmem>>, %arg8: memref<2x2xf32, #tpu.memory_space<vmem>>, %arg9: memref<2x2xf32, #tpu.memory_space<vmem>>, %arg10: memref<2x2xf32, #tpu.memory_space<vmem>>) attributes {dimension_semantics = [#tpu.dimension_semantics<parallel>, #tpu.dimension_semantics<arbitrary>], iteration_bounds = array<i64: 1, 1>, scalar_prefetch = 0 : i64, scratch_operands = 2 : i64, tpu.core_type = #tpu.core_type<tc>, window_params = [{transform_indices = @transform_0, window_bounds = array<i64: 2, 12, 2, 8>}, {pipeline_mode = #tpu.pipeline_mode<synchronous>, transform_indices = @transform_1, window_bounds = array<i64: 2, 32>}, {pipeline_mode = #tpu.pipeline_mode<synchronous>, transform_indices = @transform_2, window_bounds = array<i64: 1, 32>}, {pipeline_mode = #tpu.pipeline_mode<synchronous>, transform_indices = @transform_3, window_bounds = array<i64: 32, 2>}, {pipeline_mode = #tpu.pipeline_mode<synchronous>, transform_indices = @transform_4, window_bounds = array<i64: 1, 2>}, {transform_indices = @transform_5, window_bounds = array<i64: 2, 2>}, {transform_indices = @transform_6, window_bounds = array<i64: 2, 2>}]} {
    %c0_i32 = arith.constant 0 : i32
    %0 = arith.cmpi eq, %arg1, %c0_i32 : i32
    %1 = arith.extui %0 : i1 to i32
    %c0_i32_0 = arith.constant 0 : i32
    %2 = arith.cmpi ne, %1, %c0_i32_0 : i32
    scf.if %2 {
      %cst_187 = arith.constant 0.000000e+00 : f32
      %264 = vector.broadcast %cst_187 : f32 to vector<2x2xf32>
      %c0_188 = arith.constant 0 : index
      %c0_189 = arith.constant 0 : index
      %265 = vector.load %arg9[%c0_188, %c0_189] : memref<2x2xf32, #tpu.memory_space<vmem>>, vector<2x2xf32>
      tpu.vector_store %arg9[%c0_188, %c0_189], %264 {strides = array<i32>} : memref<2x2xf32, #tpu.memory_space<vmem>>, vector<2x2xf32>,
      %cst_190 = arith.constant 0.000000e+00 : f32
      %266 = vector.broadcast %cst_190 : f32 to vector<2x2xf32>
      %c0_191 = arith.constant 0 : index
      %c0_192 = arith.constant 0 : index
      %267 = vector.load %arg10[%c0_191, %c0_192] : memref<2x2xf32, #tpu.memory_space<vmem>>, vector<2x2xf32>
      tpu.vector_store %arg10[%c0_191, %c0_192], %266 {strides = array<i32>} : memref<2x2xf32, #tpu.memory_space<vmem>>, vector<2x2xf32>,
    } else {
    }
    %3 = tpu.iota {dimensions = array<i32: 1>} : vector<2x8xi32>
    %c8_i32 = arith.constant 8 : i32
    %4 = arith.muli %arg1, %c8_i32 : i32
    %5 = vector.broadcast %4 : i32 to vector<2x8xi32>
    %6 = arith.addi %3, %5 : vector<2x8xi32>
    %c8_i32_1 = arith.constant 8 : i32
    %7 = vector.broadcast %c8_i32_1 : i32 to vector<2x8xi32>
    %8 = arith.cmpi slt, %6, %7 : vector<2x8xi32>
    %c0 = arith.constant 0 : index
    %c0_2 = arith.constant 0 : index
    %c0_3 = arith.constant 0 : index
    %c0_4 = arith.constant 0 : index
    %9 = vector.load %arg2[%c0, %c0_2, %c0_3, %c0_4] : memref<2x12x2x8xf32, #tpu.memory_space<vmem>>, vector<1x1x2x8xf32>
    %10 = vector.shape_cast %9 : vector<1x1x2x8xf32> to vector<2x8xf32>
    %c0_i32_5 = arith.constant 0 : i32
    %11 = vector.broadcast %c0_i32_5 : i32 to vector<2x8xi32>
    %c0_6 = arith.constant 0 : index
    %c1 = arith.constant 1 : index
    %c0_7 = arith.constant 0 : index
    %c0_8 = arith.constant 0 : index
    %12 = vector.load %arg2[%c0_6, %c1, %c0_7, %c0_8] : memref<2x12x2x8xf32, #tpu.memory_space<vmem>>, vector<1x1x2x8xf32>
    %13 = vector.shape_cast %12 : vector<1x1x2x8xf32> to vector<2x8xf32>
    %14 = arith.cmpf ogt, %13, %10 : vector<2x8xf32>
    %15 = arith.select %14, %13, %10 : vector<2x8xi1>, vector<2x8xf32>
    %c1_i32 = arith.constant 1 : i32
    %16 = vector.broadcast %c1_i32 : i32 to vector<2x8xi32>
    %17 = arith.select %14, %16, %11 : vector<2x8xi1>, vector<2x8xi32>
    %c0_9 = arith.constant 0 : index
    %c2 = arith.constant 2 : index
    %c0_10 = arith.constant 0 : index
    %c0_11 = arith.constant 0 : index
    %18 = vector.load %arg2[%c0_9, %c2, %c0_10, %c0_11] : memref<2x12x2x8xf32, #tpu.memory_space<vmem>>, vector<1x1x2x8xf32>
    %19 = vector.shape_cast %18 : vector<1x1x2x8xf32> to vector<2x8xf32>
    %20 = arith.cmpf ogt, %19, %15 : vector<2x8xf32>
    %21 = arith.select %20, %19, %15 : vector<2x8xi1>, vector<2x8xf32>
    %c2_i32 = arith.constant 2 : i32
    %22 = vector.broadcast %c2_i32 : i32 to vector<2x8xi32>
    %23 = arith.select %20, %22, %17 : vector<2x8xi1>, vector<2x8xi32>
    %c0_12 = arith.constant 0 : index
    %c3 = arith.constant 3 : index
    %c0_13 = arith.constant 0 : index
    %c0_14 = arith.constant 0 : index
    %24 = vector.load %arg2[%c0_12, %c3, %c0_13, %c0_14] : memref<2x12x2x8xf32, #tpu.memory_space<vmem>>, vector<1x1x2x8xf32>
    %25 = vector.shape_cast %24 : vector<1x1x2x8xf32> to vector<2x8xf32>
    %26 = arith.cmpf ogt, %25, %21 : vector<2x8xf32>
    %27 = arith.select %26, %25, %21 : vector<2x8xi1>, vector<2x8xf32>
    %c3_i32 = arith.constant 3 : i32
    %28 = vector.broadcast %c3_i32 : i32 to vector<2x8xi32>
    %29 = arith.select %26, %28, %23 : vector<2x8xi1>, vector<2x8xi32>
    %c0_15 = arith.constant 0 : index
    %c4 = arith.constant 4 : index
    %c0_16 = arith.constant 0 : index
    %c0_17 = arith.constant 0 : index
    %30 = vector.load %arg2[%c0_15, %c4, %c0_16, %c0_17] : memref<2x12x2x8xf32, #tpu.memory_space<vmem>>, vector<1x1x2x8xf32>
    %31 = vector.shape_cast %30 : vector<1x1x2x8xf32> to vector<2x8xf32>
    %32 = arith.cmpf ogt, %31, %27 : vector<2x8xf32>
    %33 = arith.select %32, %31, %27 : vector<2x8xi1>, vector<2x8xf32>
    %c4_i32 = arith.constant 4 : i32
    %34 = vector.broadcast %c4_i32 : i32 to vector<2x8xi32>
    %35 = arith.select %32, %34, %29 : vector<2x8xi1>, vector<2x8xi32>
    %c0_18 = arith.constant 0 : index
    %c5 = arith.constant 5 : index
    %c0_19 = arith.constant 0 : index
    %c0_20 = arith.constant 0 : index
    %36 = vector.load %arg2[%c0_18, %c5, %c0_19, %c0_20] : memref<2x12x2x8xf32, #tpu.memory_space<vmem>>, vector<1x1x2x8xf32>
    %37 = vector.shape_cast %36 : vector<1x1x2x8xf32> to vector<2x8xf32>
    %38 = arith.cmpf ogt, %37, %33 : vector<2x8xf32>
    %39 = arith.select %38, %37, %33 : vector<2x8xi1>, vector<2x8xf32>
    %c5_i32 = arith.constant 5 : i32
    %40 = vector.broadcast %c5_i32 : i32 to vector<2x8xi32>
    %41 = arith.select %38, %40, %35 : vector<2x8xi1>, vector<2x8xi32>
    %c0_21 = arith.constant 0 : index
    %c6 = arith.constant 6 : index
    %c0_22 = arith.constant 0 : index
    %c0_23 = arith.constant 0 : index
    %42 = vector.load %arg2[%c0_21, %c6, %c0_22, %c0_23] : memref<2x12x2x8xf32, #tpu.memory_space<vmem>>, vector<1x1x2x8xf32>
    %43 = vector.shape_cast %42 : vector<1x1x2x8xf32> to vector<2x8xf32>
    %44 = arith.cmpf ogt, %43, %39 : vector<2x8xf32>
    %45 = arith.select %44, %43, %39 : vector<2x8xi1>, vector<2x8xf32>
    %c6_i32 = arith.constant 6 : i32
    %46 = vector.broadcast %c6_i32 : i32 to vector<2x8xi32>
    %47 = arith.select %44, %46, %41 : vector<2x8xi1>, vector<2x8xi32>
    %c0_24 = arith.constant 0 : index
    %c7 = arith.constant 7 : index
    %c0_25 = arith.constant 0 : index
    %c0_26 = arith.constant 0 : index
    %48 = vector.load %arg2[%c0_24, %c7, %c0_25, %c0_26] : memref<2x12x2x8xf32, #tpu.memory_space<vmem>>, vector<1x1x2x8xf32>
    %49 = vector.shape_cast %48 : vector<1x1x2x8xf32> to vector<2x8xf32>
    %50 = arith.cmpf ogt, %49, %45 : vector<2x8xf32>
    %51 = arith.select %50, %49, %45 : vector<2x8xi1>, vector<2x8xf32>
    %c7_i32 = arith.constant 7 : i32
    %52 = vector.broadcast %c7_i32 : i32 to vector<2x8xi32>
    %53 = arith.select %50, %52, %47 : vector<2x8xi1>, vector<2x8xi32>
    %c0_27 = arith.constant 0 : index
    %c0_28 = arith.constant 0 : index
    %c0_29 = arith.constant 0 : index
    %c0_30 = arith.constant 0 : index
    %54 = vector.load %arg2[%c0_27, %c0_28, %c0_29, %c0_30] : memref<2x12x2x8xf32, #tpu.memory_space<vmem>>, vector<1x1x2x8xf32>
    %55 = vector.shape_cast %54 : vector<1x1x2x8xf32> to vector<2x8xf32>
    %56 = arith.subf %55, %51 : vector<2x8xf32>
    %57 = math.exp %56 : vector<2x8xf32>
    %c0_31 = arith.constant 0 : index
    %c1_32 = arith.constant 1 : index
    %c0_33 = arith.constant 0 : index
    %c0_34 = arith.constant 0 : index
    %58 = vector.load %arg2[%c0_31, %c1_32, %c0_33, %c0_34] : memref<2x12x2x8xf32, #tpu.memory_space<vmem>>, vector<1x1x2x8xf32>
    %59 = vector.shape_cast %58 : vector<1x1x2x8xf32> to vector<2x8xf32>
    %60 = arith.subf %59, %51 : vector<2x8xf32>
    %61 = math.exp %60 : vector<2x8xf32>
    %62 = arith.addf %57, %61 : vector<2x8xf32>
    %c0_35 = arith.constant 0 : index
    %c2_36 = arith.constant 2 : index
    %c0_37 = arith.constant 0 : index
    %c0_38 = arith.constant 0 : index
    %63 = vector.load %arg2[%c0_35, %c2_36, %c0_37, %c0_38] : memref<2x12x2x8xf32, #tpu.memory_space<vmem>>, vector<1x1x2x8xf32>
    %64 = vector.shape_cast %63 : vector<1x1x2x8xf32> to vector<2x8xf32>
    %65 = arith.subf %64, %51 : vector<2x8xf32>
    %66 = math.exp %65 : vector<2x8xf32>
    %67 = arith.addf %62, %66 : vector<2x8xf32>
    %c0_39 = arith.constant 0 : index
    %c3_40 = arith.constant 3 : index
    %c0_41 = arith.constant 0 : index
    %c0_42 = arith.constant 0 : index
    %68 = vector.load %arg2[%c0_39, %c3_40, %c0_41, %c0_42] : memref<2x12x2x8xf32, #tpu.memory_space<vmem>>, vector<1x1x2x8xf32>
    %69 = vector.shape_cast %68 : vector<1x1x2x8xf32> to vector<2x8xf32>
    %70 = arith.subf %69, %51 : vector<2x8xf32>
    %71 = math.exp %70 : vector<2x8xf32>
    %72 = arith.addf %67, %71 : vector<2x8xf32>
    %c0_43 = arith.constant 0 : index
    %c4_44 = arith.constant 4 : index
    %c0_45 = arith.constant 0 : index
    %c0_46 = arith.constant 0 : index
    %73 = vector.load %arg2[%c0_43, %c4_44, %c0_45, %c0_46] : memref<2x12x2x8xf32, #tpu.memory_space<vmem>>, vector<1x1x2x8xf32>
    %74 = vector.shape_cast %73 : vector<1x1x2x8xf32> to vector<2x8xf32>
    %75 = arith.subf %74, %51 : vector<2x8xf32>
    %76 = math.exp %75 : vector<2x8xf32>
    %77 = arith.addf %72, %76 : vector<2x8xf32>
    %c0_47 = arith.constant 0 : index
    %c5_48 = arith.constant 5 : index
    %c0_49 = arith.constant 0 : index
    %c0_50 = arith.constant 0 : index
    %78 = vector.load %arg2[%c0_47, %c5_48, %c0_49, %c0_50] : memref<2x12x2x8xf32, #tpu.memory_space<vmem>>, vector<1x1x2x8xf32>
    %79 = vector.shape_cast %78 : vector<1x1x2x8xf32> to vector<2x8xf32>
    %80 = arith.subf %79, %51 : vector<2x8xf32>
    %81 = math.exp %80 : vector<2x8xf32>
    %82 = arith.addf %77, %81 : vector<2x8xf32>
    %c0_51 = arith.constant 0 : index
    %c6_52 = arith.constant 6 : index
    %c0_53 = arith.constant 0 : index
    %c0_54 = arith.constant 0 : index
    %83 = vector.load %arg2[%c0_51, %c6_52, %c0_53, %c0_54] : memref<2x12x2x8xf32, #tpu.memory_space<vmem>>, vector<1x1x2x8xf32>
    %84 = vector.shape_cast %83 : vector<1x1x2x8xf32> to vector<2x8xf32>
    %85 = arith.subf %84, %51 : vector<2x8xf32>
    %86 = math.exp %85 : vector<2x8xf32>
    %87 = arith.addf %82, %86 : vector<2x8xf32>
    %c0_55 = arith.constant 0 : index
    %c7_56 = arith.constant 7 : index
    %c0_57 = arith.constant 0 : index
    %c0_58 = arith.constant 0 : index
    %88 = vector.load %arg2[%c0_55, %c7_56, %c0_57, %c0_58] : memref<2x12x2x8xf32, #tpu.memory_space<vmem>>, vector<1x1x2x8xf32>
    %89 = vector.shape_cast %88 : vector<1x1x2x8xf32> to vector<2x8xf32>
    %90 = arith.subf %89, %51 : vector<2x8xf32>
    %91 = math.exp %90 : vector<2x8xf32>
    %92 = arith.addf %87, %91 : vector<2x8xf32>
    %93 = math.log %92 : vector<2x8xf32>
    %cst = arith.constant 0.000000e+00 : f32
    %94 = vector.broadcast %cst : f32 to vector<2x8xf32>
    %95 = arith.subf %94, %93 : vector<2x8xf32>
    %c7_i32_59 = arith.constant 7 : i32
    %96 = vector.broadcast %c7_i32_59 : i32 to vector<2x8xi32>
    %97 = arith.cmpi ne, %53, %96 : vector<2x8xi32>
    %98 = arith.andi %97, %8 : vector<2x8xi1>
    %cst_60 = arith.constant 0.000000e+00 : f32
    %99 = vector.broadcast %cst_60 : f32 to vector<2x8xf32>
    %100 = arith.select %98, %95, %99 : vector<2x8xi1>, vector<2x8xf32>
    %cst_61 = arith.constant dense<0.000000e+00> : vector<2xf32>
    %101 = vector.multi_reduction <add>, %100, %cst_61 [1] : vector<2x8xf32> to vector<2xf32>
    %102 = vector.shape_cast %101 : vector<2xf32> to vector<2x1xf32>
    %103 = arith.extui %98 : vector<2x8xi1> to vector<2x8xi32>
    %104 = arith.sitofp %103 : vector<2x8xi32> to vector<2x8xf32>
    %cst_62 = arith.constant dense<0.000000e+00> : vector<2xf32>
    %105 = vector.multi_reduction <add>, %104, %cst_62 [1] : vector<2x8xf32> to vector<2xf32>
    %106 = vector.shape_cast %105 : vector<2xf32> to vector<2x1xf32>
    %c0_63 = arith.constant 0 : index
    %c0_64 = arith.constant 0 : index
    %107 = vector.load %arg9[%c0_63, %c0_64] : memref<2x2xf32, #tpu.memory_space<vmem>>, vector<2x1xf32>
    %108 = arith.addf %107, %102 : vector<2x1xf32>
    %c0_65 = arith.constant 0 : index
    %c0_66 = arith.constant 0 : index
    %109 = vector.load %arg9[%c0_65, %c0_66] : memref<2x2xf32, #tpu.memory_space<vmem>>, vector<2x1xf32>
    tpu.vector_store %arg9[%c0_65, %c0_66], %108 {strides = array<i32>} : memref<2x2xf32, #tpu.memory_space<vmem>>, vector<2x1xf32>,
    %c0_67 = arith.constant 0 : index
    %c0_68 = arith.constant 0 : index
    %110 = vector.load %arg10[%c0_67, %c0_68] : memref<2x2xf32, #tpu.memory_space<vmem>>, vector<2x1xf32>
    %111 = arith.addf %110, %106 : vector<2x1xf32>
    %c0_69 = arith.constant 0 : index
    %c0_70 = arith.constant 0 : index
    %112 = vector.load %arg10[%c0_69, %c0_70] : memref<2x2xf32, #tpu.memory_space<vmem>>, vector<2x1xf32>
    tpu.vector_store %arg10[%c0_69, %c0_70], %111 {strides = array<i32>} : memref<2x2xf32, #tpu.memory_space<vmem>>, vector<2x1xf32>,
    %c1_71 = arith.constant 1 : index
    %c0_72 = arith.constant 0 : index
    %c0_73 = arith.constant 0 : index
    %c0_74 = arith.constant 0 : index
    %113 = vector.load %arg2[%c1_71, %c0_72, %c0_73, %c0_74] : memref<2x12x2x8xf32, #tpu.memory_space<vmem>>, vector<1x1x2x8xf32>
    %114 = vector.shape_cast %113 : vector<1x1x2x8xf32> to vector<2x8xf32>
    %c0_i32_75 = arith.constant 0 : i32
    %115 = vector.broadcast %c0_i32_75 : i32 to vector<2x8xi32>
    %c1_76 = arith.constant 1 : index
    %c1_77 = arith.constant 1 : index
    %c0_78 = arith.constant 0 : index
    %c0_79 = arith.constant 0 : index
    %116 = vector.load %arg2[%c1_76, %c1_77, %c0_78, %c0_79] : memref<2x12x2x8xf32, #tpu.memory_space<vmem>>, vector<1x1x2x8xf32>
    %117 = vector.shape_cast %116 : vector<1x1x2x8xf32> to vector<2x8xf32>
    %118 = arith.cmpf ogt, %117, %114 : vector<2x8xf32>
    %119 = arith.select %118, %117, %114 : vector<2x8xi1>, vector<2x8xf32>
    %c1_i32_80 = arith.constant 1 : i32
    %120 = vector.broadcast %c1_i32_80 : i32 to vector<2x8xi32>
    %121 = arith.select %118, %120, %115 : vector<2x8xi1>, vector<2x8xi32>
    %c1_81 = arith.constant 1 : index
    %c2_82 = arith.constant 2 : index
    %c0_83 = arith.constant 0 : index
    %c0_84 = arith.constant 0 : index
    %122 = vector.load %arg2[%c1_81, %c2_82, %c0_83, %c0_84] : memref<2x12x2x8xf32, #tpu.memory_space<vmem>>, vector<1x1x2x8xf32>
    %123 = vector.shape_cast %122 : vector<1x1x2x8xf32> to vector<2x8xf32>
    %124 = arith.cmpf ogt, %123, %119 : vector<2x8xf32>
    %125 = arith.select %124, %123, %119 : vector<2x8xi1>, vector<2x8xf32>
    %c2_i32_85 = arith.constant 2 : i32
    %126 = vector.broadcast %c2_i32_85 : i32 to vector<2x8xi32>
    %127 = arith.select %124, %126, %121 : vector<2x8xi1>, vector<2x8xi32>
    %c1_86 = arith.constant 1 : index
    %c3_87 = arith.constant 3 : index
    %c0_88 = arith.constant 0 : index
    %c0_89 = arith.constant 0 : index
    %128 = vector.load %arg2[%c1_86, %c3_87, %c0_88, %c0_89] : memref<2x12x2x8xf32, #tpu.memory_space<vmem>>, vector<1x1x2x8xf32>
    %129 = vector.shape_cast %128 : vector<1x1x2x8xf32> to vector<2x8xf32>
    %130 = arith.cmpf ogt, %129, %125 : vector<2x8xf32>
    %131 = arith.select %130, %129, %125 : vector<2x8xi1>, vector<2x8xf32>
    %c3_i32_90 = arith.constant 3 : i32
    %132 = vector.broadcast %c3_i32_90 : i32 to vector<2x8xi32>
    %133 = arith.select %130, %132, %127 : vector<2x8xi1>, vector<2x8xi32>
    %c1_91 = arith.constant 1 : index
    %c4_92 = arith.constant 4 : index
    %c0_93 = arith.constant 0 : index
    %c0_94 = arith.constant 0 : index
    %134 = vector.load %arg2[%c1_91, %c4_92, %c0_93, %c0_94] : memref<2x12x2x8xf32, #tpu.memory_space<vmem>>, vector<1x1x2x8xf32>
    %135 = vector.shape_cast %134 : vector<1x1x2x8xf32> to vector<2x8xf32>
    %136 = arith.cmpf ogt, %135, %131 : vector<2x8xf32>
    %137 = arith.select %136, %135, %131 : vector<2x8xi1>, vector<2x8xf32>
    %c4_i32_95 = arith.constant 4 : i32
    %138 = vector.broadcast %c4_i32_95 : i32 to vector<2x8xi32>
    %139 = arith.select %136, %138, %133 : vector<2x8xi1>, vector<2x8xi32>
    %c1_96 = arith.constant 1 : index
    %c5_97 = arith.constant 5 : index
    %c0_98 = arith.constant 0 : index
    %c0_99 = arith.constant 0 : index
    %140 = vector.load %arg2[%c1_96, %c5_97, %c0_98, %c0_99] : memref<2x12x2x8xf32, #tpu.memory_space<vmem>>, vector<1x1x2x8xf32>
    %141 = vector.shape_cast %140 : vector<1x1x2x8xf32> to vector<2x8xf32>
    %142 = arith.cmpf ogt, %141, %137 : vector<2x8xf32>
    %143 = arith.select %142, %141, %137 : vector<2x8xi1>, vector<2x8xf32>
    %c5_i32_100 = arith.constant 5 : i32
    %144 = vector.broadcast %c5_i32_100 : i32 to vector<2x8xi32>
    %145 = arith.select %142, %144, %139 : vector<2x8xi1>, vector<2x8xi32>
    %c1_101 = arith.constant 1 : index
    %c6_102 = arith.constant 6 : index
    %c0_103 = arith.constant 0 : index
    %c0_104 = arith.constant 0 : index
    %146 = vector.load %arg2[%c1_101, %c6_102, %c0_103, %c0_104] : memref<2x12x2x8xf32, #tpu.memory_space<vmem>>, vector<1x1x2x8xf32>
    %147 = vector.shape_cast %146 : vector<1x1x2x8xf32> to vector<2x8xf32>
    %148 = arith.cmpf ogt, %147, %143 : vector<2x8xf32>
    %149 = arith.select %148, %147, %143 : vector<2x8xi1>, vector<2x8xf32>
    %c6_i32_105 = arith.constant 6 : i32
    %150 = vector.broadcast %c6_i32_105 : i32 to vector<2x8xi32>
    %151 = arith.select %148, %150, %145 : vector<2x8xi1>, vector<2x8xi32>
    %c1_106 = arith.constant 1 : index
    %c7_107 = arith.constant 7 : index
    %c0_108 = arith.constant 0 : index
    %c0_109 = arith.constant 0 : index
    %152 = vector.load %arg2[%c1_106, %c7_107, %c0_108, %c0_109] : memref<2x12x2x8xf32, #tpu.memory_space<vmem>>, vector<1x1x2x8xf32>
    %153 = vector.shape_cast %152 : vector<1x1x2x8xf32> to vector<2x8xf32>
    %154 = arith.cmpf ogt, %153, %149 : vector<2x8xf32>
    %155 = arith.select %154, %153, %149 : vector<2x8xi1>, vector<2x8xf32>
    %c7_i32_110 = arith.constant 7 : i32
    %156 = vector.broadcast %c7_i32_110 : i32 to vector<2x8xi32>
    %157 = arith.select %154, %156, %151 : vector<2x8xi1>, vector<2x8xi32>
    %c1_111 = arith.constant 1 : index
    %c8 = arith.constant 8 : index
    %c0_112 = arith.constant 0 : index
    %c0_113 = arith.constant 0 : index
    %158 = vector.load %arg2[%c1_111, %c8, %c0_112, %c0_113] : memref<2x12x2x8xf32, #tpu.memory_space<vmem>>, vector<1x1x2x8xf32>
    %159 = vector.shape_cast %158 : vector<1x1x2x8xf32> to vector<2x8xf32>
    %160 = arith.cmpf ogt, %159, %155 : vector<2x8xf32>
    %161 = arith.select %160, %159, %155 : vector<2x8xi1>, vector<2x8xf32>
    %c8_i32_114 = arith.constant 8 : i32
    %162 = vector.broadcast %c8_i32_114 : i32 to vector<2x8xi32>
    %163 = arith.select %160, %162, %157 : vector<2x8xi1>, vector<2x8xi32>
    %c1_115 = arith.constant 1 : index
    %c9 = arith.constant 9 : index
    %c0_116 = arith.constant 0 : index
    %c0_117 = arith.constant 0 : index
    %164 = vector.load %arg2[%c1_115, %c9, %c0_116, %c0_117] : memref<2x12x2x8xf32, #tpu.memory_space<vmem>>, vector<1x1x2x8xf32>
    %165 = vector.shape_cast %164 : vector<1x1x2x8xf32> to vector<2x8xf32>
    %166 = arith.cmpf ogt, %165, %161 : vector<2x8xf32>
    %167 = arith.select %166, %165, %161 : vector<2x8xi1>, vector<2x8xf32>
    %c9_i32 = arith.constant 9 : i32
    %168 = vector.broadcast %c9_i32 : i32 to vector<2x8xi32>
    %169 = arith.select %166, %168, %163 : vector<2x8xi1>, vector<2x8xi32>
    %c1_118 = arith.constant 1 : index
    %c10 = arith.constant 10 : index
    %c0_119 = arith.constant 0 : index
    %c0_120 = arith.constant 0 : index
    %170 = vector.load %arg2[%c1_118, %c10, %c0_119, %c0_120] : memref<2x12x2x8xf32, #tpu.memory_space<vmem>>, vector<1x1x2x8xf32>
    %171 = vector.shape_cast %170 : vector<1x1x2x8xf32> to vector<2x8xf32>
    %172 = arith.cmpf ogt, %171, %167 : vector<2x8xf32>
    %173 = arith.select %172, %171, %167 : vector<2x8xi1>, vector<2x8xf32>
    %c10_i32 = arith.constant 10 : i32
    %174 = vector.broadcast %c10_i32 : i32 to vector<2x8xi32>
    %175 = arith.select %172, %174, %169 : vector<2x8xi1>, vector<2x8xi32>
    %c1_121 = arith.constant 1 : index
    %c11 = arith.constant 11 : index
    %c0_122 = arith.constant 0 : index
    %c0_123 = arith.constant 0 : index
    %176 = vector.load %arg2[%c1_121, %c11, %c0_122, %c0_123] : memref<2x12x2x8xf32, #tpu.memory_space<vmem>>, vector<1x1x2x8xf32>
    %177 = vector.shape_cast %176 : vector<1x1x2x8xf32> to vector<2x8xf32>
    %178 = arith.cmpf ogt, %177, %173 : vector<2x8xf32>
    %179 = arith.select %178, %177, %173 : vector<2x8xi1>, vector<2x8xf32>
    %c11_i32 = arith.constant 11 : i32
    %180 = vector.broadcast %c11_i32 : i32 to vector<2x8xi32>
    %181 = arith.select %178, %180, %175 : vector<2x8xi1>, vector<2x8xi32>
    %c1_124 = arith.constant 1 : index
    %c0_125 = arith.constant 0 : index
    %c0_126 = arith.constant 0 : index
    %c0_127 = arith.constant 0 : index
    %182 = vector.load %arg2[%c1_124, %c0_125, %c0_126, %c0_127] : memref<2x12x2x8xf32, #tpu.memory_space<vmem>>, vector<1x1x2x8xf32>
    %183 = vector.shape_cast %182 : vector<1x1x2x8xf32> to vector<2x8xf32>
    %184 = arith.subf %183, %179 : vector<2x8xf32>
    %185 = math.exp %184 : vector<2x8xf32>
    %c1_128 = arith.constant 1 : index
    %c1_129 = arith.constant 1 : index
    %c0_130 = arith.constant 0 : index
    %c0_131 = arith.constant 0 : index
    %186 = vector.load %arg2[%c1_128, %c1_129, %c0_130, %c0_131] : memref<2x12x2x8xf32, #tpu.memory_space<vmem>>, vector<1x1x2x8xf32>
    %187 = vector.shape_cast %186 : vector<1x1x2x8xf32> to vector<2x8xf32>
    %188 = arith.subf %187, %179 : vector<2x8xf32>
    %189 = math.exp %188 : vector<2x8xf32>
    %190 = arith.addf %185, %189 : vector<2x8xf32>
    %c1_132 = arith.constant 1 : index
    %c2_133 = arith.constant 2 : index
    %c0_134 = arith.constant 0 : index
    %c0_135 = arith.constant 0 : index
    %191 = vector.load %arg2[%c1_132, %c2_133, %c0_134, %c0_135] : memref<2x12x2x8xf32, #tpu.memory_space<vmem>>, vector<1x1x2x8xf32>
    %192 = vector.shape_cast %191 : vector<1x1x2x8xf32> to vector<2x8xf32>
    %193 = arith.subf %192, %179 : vector<2x8xf32>
    %194 = math.exp %193 : vector<2x8xf32>
    %195 = arith.addf %190, %194 : vector<2x8xf32>
    %c1_136 = arith.constant 1 : index
    %c3_137 = arith.constant 3 : index
    %c0_138 = arith.constant 0 : index
    %c0_139 = arith.constant 0 : index
    %196 = vector.load %arg2[%c1_136, %c3_137, %c0_138, %c0_139] : memref<2x12x2x8xf32, #tpu.memory_space<vmem>>, vector<1x1x2x8xf32>
    %197 = vector.shape_cast %196 : vector<1x1x2x8xf32> to vector<2x8xf32>
    %198 = arith.subf %197, %179 : vector<2x8xf32>
    %199 = math.exp %198 : vector<2x8xf32>
    %200 = arith.addf %195, %199 : vector<2x8xf32>
    %c1_140 = arith.constant 1 : index
    %c4_141 = arith.constant 4 : index
    %c0_142 = arith.constant 0 : index
    %c0_143 = arith.constant 0 : index
    %201 = vector.load %arg2[%c1_140, %c4_141, %c0_142, %c0_143] : memref<2x12x2x8xf32, #tpu.memory_space<vmem>>, vector<1x1x2x8xf32>
    %202 = vector.shape_cast %201 : vector<1x1x2x8xf32> to vector<2x8xf32>
    %203 = arith.subf %202, %179 : vector<2x8xf32>
    %204 = math.exp %203 : vector<2x8xf32>
    %205 = arith.addf %200, %204 : vector<2x8xf32>
    %c1_144 = arith.constant 1 : index
    %c5_145 = arith.constant 5 : index
    %c0_146 = arith.constant 0 : index
    %c0_147 = arith.constant 0 : index
    %206 = vector.load %arg2[%c1_144, %c5_145, %c0_146, %c0_147] : memref<2x12x2x8xf32, #tpu.memory_space<vmem>>, vector<1x1x2x8xf32>
    %207 = vector.shape_cast %206 : vector<1x1x2x8xf32> to vector<2x8xf32>
    %208 = arith.subf %207, %179 : vector<2x8xf32>
    %209 = math.exp %208 : vector<2x8xf32>
    %210 = arith.addf %205, %209 : vector<2x8xf32>
    %c1_148 = arith.constant 1 : index
    %c6_149 = arith.constant 6 : index
    %c0_150 = arith.constant 0 : index
    %c0_151 = arith.constant 0 : index
    %211 = vector.load %arg2[%c1_148, %c6_149, %c0_150, %c0_151] : memref<2x12x2x8xf32, #tpu.memory_space<vmem>>, vector<1x1x2x8xf32>
    %212 = vector.shape_cast %211 : vector<1x1x2x8xf32> to vector<2x8xf32>
    %213 = arith.subf %212, %179 : vector<2x8xf32>
    %214 = math.exp %213 : vector<2x8xf32>
    %215 = arith.addf %210, %214 : vector<2x8xf32>
    %c1_152 = arith.constant 1 : index
    %c7_153 = arith.constant 7 : index
    %c0_154 = arith.constant 0 : index
    %c0_155 = arith.constant 0 : index
    %216 = vector.load %arg2[%c1_152, %c7_153, %c0_154, %c0_155] : memref<2x12x2x8xf32, #tpu.memory_space<vmem>>, vector<1x1x2x8xf32>
    %217 = vector.shape_cast %216 : vector<1x1x2x8xf32> to vector<2x8xf32>
    %218 = arith.subf %217, %179 : vector<2x8xf32>
    %219 = math.exp %218 : vector<2x8xf32>
    %220 = arith.addf %215, %219 : vector<2x8xf32>
    %c1_156 = arith.constant 1 : index
    %c8_157 = arith.constant 8 : index
    %c0_158 = arith.constant 0 : index
    %c0_159 = arith.constant 0 : index
    %221 = vector.load %arg2[%c1_156, %c8_157, %c0_158, %c0_159] : memref<2x12x2x8xf32, #tpu.memory_space<vmem>>, vector<1x1x2x8xf32>
    %222 = vector.shape_cast %221 : vector<1x1x2x8xf32> to vector<2x8xf32>
    %223 = arith.subf %222, %179 : vector<2x8xf32>
    %224 = math.exp %223 : vector<2x8xf32>
    %225 = arith.addf %220, %224 : vector<2x8xf32>
    %c1_160 = arith.constant 1 : index
    %c9_161 = arith.constant 9 : index
    %c0_162 = arith.constant 0 : index
    %c0_163 = arith.constant 0 : index
    %226 = vector.load %arg2[%c1_160, %c9_161, %c0_162, %c0_163] : memref<2x12x2x8xf32, #tpu.memory_space<vmem>>, vector<1x1x2x8xf32>
    %227 = vector.shape_cast %226 : vector<1x1x2x8xf32> to vector<2x8xf32>
    %228 = arith.subf %227, %179 : vector<2x8xf32>
    %229 = math.exp %228 : vector<2x8xf32>
    %230 = arith.addf %225, %229 : vector<2x8xf32>
    %c1_164 = arith.constant 1 : index
    %c10_165 = arith.constant 10 : index
    %c0_166 = arith.constant 0 : index
    %c0_167 = arith.constant 0 : index
    %231 = vector.load %arg2[%c1_164, %c10_165, %c0_166, %c0_167] : memref<2x12x2x8xf32, #tpu.memory_space<vmem>>, vector<1x1x2x8xf32>
    %232 = vector.shape_cast %231 : vector<1x1x2x8xf32> to vector<2x8xf32>
    %233 = arith.subf %232, %179 : vector<2x8xf32>
    %234 = math.exp %233 : vector<2x8xf32>
    %235 = arith.addf %230, %234 : vector<2x8xf32>
    %c1_168 = arith.constant 1 : index
    %c11_169 = arith.constant 11 : index
    %c0_170 = arith.constant 0 : index
    %c0_171 = arith.constant 0 : index
    %236 = vector.load %arg2[%c1_168, %c11_169, %c0_170, %c0_171] : memref<2x12x2x8xf32, #tpu.memory_space<vmem>>, vector<1x1x2x8xf32>
    %237 = vector.shape_cast %236 : vector<1x1x2x8xf32> to vector<2x8xf32>
    %238 = arith.subf %237, %179 : vector<2x8xf32>
    %239 = math.exp %238 : vector<2x8xf32>
    %240 = arith.addf %235, %239 : vector<2x8xf32>
    %241 = math.log %240 : vector<2x8xf32>
    %cst_172 = arith.constant 0.000000e+00 : f32
    %242 = vector.broadcast %cst_172 : f32 to vector<2x8xf32>
    %243 = arith.subf %242, %241 : vector<2x8xf32>
    %c11_i32_173 = arith.constant 11 : i32
    %244 = vector.broadcast %c11_i32_173 : i32 to vector<2x8xi32>
    %245 = arith.cmpi ne, %181, %244 : vector<2x8xi32>
    %246 = arith.andi %245, %8 : vector<2x8xi1>
    %cst_174 = arith.constant 0.000000e+00 : f32
    %247 = vector.broadcast %cst_174 : f32 to vector<2x8xf32>
    %248 = arith.select %246, %243, %247 : vector<2x8xi1>, vector<2x8xf32>
    %cst_175 = arith.constant dense<0.000000e+00> : vector<2xf32>
    %249 = vector.multi_reduction <add>, %248, %cst_175 [1] : vector<2x8xf32> to vector<2xf32>
    %250 = vector.shape_cast %249 : vector<2xf32> to vector<2x1xf32>
    %251 = arith.extui %246 : vector<2x8xi1> to vector<2x8xi32>
    %252 = arith.sitofp %251 : vector<2x8xi32> to vector<2x8xf32>
    %cst_176 = arith.constant dense<0.000000e+00> : vector<2xf32>
    %253 = vector.multi_reduction <add>, %252, %cst_176 [1] : vector<2x8xf32> to vector<2xf32>
    %254 = vector.shape_cast %253 : vector<2xf32> to vector<2x1xf32>
    %c0_177 = arith.constant 0 : index
    %c1_178 = arith.constant 1 : index
    %255 = vector.load %arg9[%c0_177, %c1_178] : memref<2x2xf32, #tpu.memory_space<vmem>>, vector<2x1xf32>
    %256 = arith.addf %255, %250 : vector<2x1xf32>
    %c0_179 = arith.constant 0 : index
    %c1_180 = arith.constant 1 : index
    %257 = vector.load %arg9[%c0_179, %c1_180] : memref<2x2xf32, #tpu.memory_space<vmem>>, vector<2x1xf32>
    tpu.vector_store %arg9[%c0_179, %c1_180], %256 {strides = array<i32>} : memref<2x2xf32, #tpu.memory_space<vmem>>, vector<2x1xf32>,
    %c0_181 = arith.constant 0 : index
    %c1_182 = arith.constant 1 : index
    %258 = vector.load %arg10[%c0_181, %c1_182] : memref<2x2xf32, #tpu.memory_space<vmem>>, vector<2x1xf32>
    %259 = arith.addf %258, %254 : vector<2x1xf32>
    %c0_183 = arith.constant 0 : index
    %c1_184 = arith.constant 1 : index
    %260 = vector.load %arg10[%c0_183, %c1_184] : memref<2x2xf32, #tpu.memory_space<vmem>>, vector<2x1xf32>
    tpu.vector_store %arg10[%c0_183, %c1_184], %259 {strides = array<i32>} : memref<2x2xf32, #tpu.memory_space<vmem>>, vector<2x1xf32>,
    %c0_i32_185 = arith.constant 0 : i32
    %261 = arith.cmpi eq, %arg1, %c0_i32_185 : i32
    %262 = arith.extui %261 : i1 to i32
    %c0_i32_186 = arith.constant 0 : i32
    %263 = arith.cmpi ne, %262, %c0_i32_186 : i32
    scf.if %263 {
      %cst_187 = arith.constant 0.000000e+00 : f32
      %264 = vector.broadcast %cst_187 : f32 to vector<2x2xf32>
      %c0_188 = arith.constant 0 : index
      %c0_189 = arith.constant 0 : index
      %265 = vector.load %arg7[%c0_188, %c0_189] : memref<2x2xf32, #tpu.memory_space<vmem>>, vector<2x2xf32>
      tpu.vector_store %arg7[%c0_188, %c0_189], %264 {strides = array<i32>} : memref<2x2xf32, #tpu.memory_space<vmem>>, vector<2x2xf32>,
      %c0_190 = arith.constant 0 : index
      %c0_191 = arith.constant 0 : index
      %266 = vector.load %arg10[%c0_190, %c0_191] : memref<2x2xf32, #tpu.memory_space<vmem>>, vector<2x1xf32>
      %cst_192 = arith.constant 1.9459101 : f32
      %267 = vector.broadcast %cst_192 : f32 to vector<2x1xf32>
      %268 = arith.mulf %266, %267 : vector<2x1xf32>
      %cst_193 = arith.constant 9.99999974E-6 : f32
      %269 = vector.broadcast %cst_193 : f32 to vector<2x1xf32>
      %270 = arith.addf %268, %269 : vector<2x1xf32>
      %c0_194 = arith.constant 0 : index
      %c0_195 = arith.constant 0 : index
      %271 = vector.load %arg9[%c0_194, %c0_195] : memref<2x2xf32, #tpu.memory_space<vmem>>, vector<2x1xf32>
      %272 = tpu.reciprocal %270 {approx = true} : vector<2x1xf32> -> vector<2x1xf32>
      %273 = arith.mulf %271, %272 : vector<2x1xf32>
      %c0_196 = arith.constant 0 : index
      %c0_197 = arith.constant 0 : index
      %274 = vector.load %arg7[%c0_196, %c0_197] : memref<2x2xf32, #tpu.memory_space<vmem>>, vector<2x1xf32>
      tpu.vector_store %arg7[%c0_196, %c0_197], %273 {strides = array<i32>} : memref<2x2xf32, #tpu.memory_space<vmem>>, vector<2x1xf32>,
      %c0_198 = arith.constant 0 : index
      %c1_199 = arith.constant 1 : index
      %275 = vector.load %arg10[%c0_198, %c1_199] : memref<2x2xf32, #tpu.memory_space<vmem>>, vector<2x1xf32>
      %cst_200 = arith.constant 2.39789534 : f32
      %276 = vector.broadcast %cst_200 : f32 to vector<2x1xf32>
      %277 = arith.mulf %275, %276 : vector<2x1xf32>
      %cst_201 = arith.constant 9.99999974E-6 : f32
      %278 = vector.broadcast %cst_201 : f32 to vector<2x1xf32>
      %279 = arith.addf %277, %278 : vector<2x1xf32>
      %c0_202 = arith.constant 0 : index
      %c1_203 = arith.constant 1 : index
      %280 = vector.load %arg9[%c0_202, %c1_203] : memref<2x2xf32, #tpu.memory_space<vmem>>, vector<2x1xf32>
      %281 = tpu.reciprocal %279 {approx = true} : vector<2x1xf32> -> vector<2x1xf32>
      %282 = arith.mulf %280, %281 : vector<2x1xf32>
      %c0_204 = arith.constant 0 : index
      %c1_205 = arith.constant 1 : index
      %283 = vector.load %arg7[%c0_204, %c1_205] : memref<2x2xf32, #tpu.memory_space<vmem>>, vector<2x1xf32>
      tpu.vector_store %arg7[%c0_204, %c1_205], %282 {strides = array<i32>} : memref<2x2xf32, #tpu.memory_space<vmem>>, vector<2x1xf32>,
      %c0_206 = arith.constant 0 : index
      %c0_207 = arith.constant 0 : index
      %284 = vector.load %arg7[%c0_206, %c0_207] : memref<2x2xf32, #tpu.memory_space<vmem>>, vector<2x2xf32>
      %c0_208 = arith.constant 0 : index
      %c0_209 = arith.constant 0 : index
      %285 = vector.load %arg3[%c0_208, %c0_209] : memref<2x32xf32, #tpu.memory_space<vmem>>, vector<2x32xf32>
      %cst_210 = arith.constant dense<0.000000e+00> : vector<2x32xf32>
      %286 = tpu.matmul %284, %285, %cst_210 {dimension_numbers = #tpu.dot_dimension_numbers<[1], [0], [0], [1], [0, 0, 1, 1], [], []>} : vector<2x2xf32>, vector<2x32xf32>, vector<2x32xf32> -> vector<2x32xf32>
      %c0_211 = arith.constant 0 : index
      %c0_212 = arith.constant 0 : index
      %287 = vector.load %arg4[%c0_211, %c0_212] : memref<1x32xf32, #tpu.memory_space<vmem>>, vector<1x32xf32>
      %288 = vector.broadcast %287 : vector<1x32xf32> to vector<2x32xf32>
      %289 = arith.addf %286, %288 : vector<2x32xf32>
      %cst_213 = arith.constant 0.000000e+00 : f32
      %290 = vector.broadcast %cst_213 : f32 to vector<2x32xf32>
      %291 = arith.maximumf %289, %290 : vector<2x32xf32>
      %c0_214 = arith.constant 0 : index
      %c0_215 = arith.constant 0 : index
      %292 = vector.load %arg5[%c0_214, %c0_215] : memref<32x2xf32, #tpu.memory_space<vmem>>, vector<32x2xf32>
      %cst_216 = arith.constant dense<0.000000e+00> : vector<2x2xf32>
      %293 = tpu.matmul %291, %292, %cst_216 {dimension_numbers = #tpu.dot_dimension_numbers<[1], [0], [0], [1], [0, 0, 1, 1], [], []>} : vector<2x32xf32>, vector<32x2xf32>, vector<2x2xf32> -> vector<2x2xf32>
      %c0_217 = arith.constant 0 : index
      %c0_218 = arith.constant 0 : index
      %294 = vector.load %arg6[%c0_217, %c0_218] : memref<1x2xf32, #tpu.memory_space<vmem>>, vector<1x2xf32>
      %295 = vector.broadcast %294 : vector<1x2xf32> to vector<2x2xf32>
      %296 = arith.addf %293, %295 : vector<2x2xf32>
      %c0_219 = arith.constant 0 : index
      %c0_220 = arith.constant 0 : index
      %297 = vector.load %arg8[%c0_219, %c0_220] : memref<2x2xf32, #tpu.memory_space<vmem>>, vector<2x2xf32>
      tpu.vector_store %arg8[%c0_219, %c0_220], %296 {strides = array<i32>} : memref<2x2xf32, #tpu.memory_space<vmem>>, vector<2x2xf32>,
    } else {
    }
    return
  }
  func.func @transform_0(%arg0: i32, %arg1: i32) -> (i32, i32, i32, i32) {
    %c0_i32 = arith.constant 0 : i32
    %c0_i32_0 = arith.constant 0 : i32
    %c0_i32_1 = arith.constant 0 : i32
    return %c0_i32, %c0_i32_0, %arg0, %arg1 : i32, i32, i32, i32
  }
  func.func @transform_1(%arg0: i32, %arg1: i32) -> (i32, i32) {
    %c0_i32 = arith.constant 0 : i32
    %c0_i32_0 = arith.constant 0 : i32
    %c0_i32_1 = arith.constant 0 : i32
    return %c0_i32, %c0_i32_0 : i32, i32
  }
  func.func @transform_2(%arg0: i32, %arg1: i32) -> (i32, i32) {
    %c0_i32 = arith.constant 0 : i32
    %c0_i32_0 = arith.constant 0 : i32
    %c0_i32_1 = arith.constant 0 : i32
    return %c0_i32, %c0_i32_0 : i32, i32
  }
  func.func @transform_3(%arg0: i32, %arg1: i32) -> (i32, i32) {
    %c0_i32 = arith.constant 0 : i32
    %c0_i32_0 = arith.constant 0 : i32
    %c0_i32_1 = arith.constant 0 : i32
    return %c0_i32, %c0_i32_0 : i32, i32
  }
  func.func @transform_4(%arg0: i32, %arg1: i32) -> (i32, i32) {
    %c0_i32 = arith.constant 0 : i32
    %c0_i32_0 = arith.constant 0 : i32
    %c0_i32_1 = arith.constant 0 : i32
    return %c0_i32, %c0_i32_0 : i32, i32
  }
  func.func @transform_5(%arg0: i32, %arg1: i32) -> (i32, i32) {
    %c0_i32 = arith.constant 0 : i32
    %c0_i32_0 = arith.constant 0 : i32
    return %arg0, %c0_i32 : i32, i32
  }
  func.func @transform_6(%arg0: i32, %arg1: i32) -> (i32, i32) {
    %c0_i32 = arith.constant 0 : i32
    %c0_i32_0 = arith.constant 0 : i32
    return %arg0, %c0_i32 : i32, i32
  }
}

</mosaic_0001>

<llo_original>
// kernel: tpu_custom_call.1
$region0: #{tpu_custom_call.1}
  #allocation0 [shape = 'u32[]', space=smem, size = 0x4, offset = 0x4, fixed_abs, tag = 'smem constant byte address 0x4 - core index']
  #allocation1 [shape = 'u32[144,128]{1,0:T(1,128)}', space=vmem, size = 0x12000, scoped, tag = 'internal scratch']
  #allocation2 [shape = 'f32[2,2]{1,0:T(2,128)}', space=vmem, size = 0x400, scoped, tag = 'scratch operand']
  #allocation3 [shape = 'f32[2,2]{1,0:T(2,128)}', space=vmem, size = 0x400, scoped, tag = 'scratch operand']
  %s0 = inlined_call_operand.vmem [shape: f32[2,12,2,8], index: 0, kind: input, shape index: {}]
  %s1 = inlined_call_operand.vmem [shape: f32[2,32], index: 1, kind: input, shape index: {}]
  %s2 = inlined_call_operand.vmem [shape: f32[1,32], index: 2, kind: input, shape index: {}]
  %s3 = inlined_call_operand.vmem [shape: f32[32,2], index: 3, kind: input, shape index: {}]
  %s4 = inlined_call_operand.vmem [shape: f32[1,2], index: 4, kind: input, shape index: {}]
  %s5 = inlined_call_operand.hbm [shape: f32[2,2], index: 5, kind: output, shape index: {0}]
  %s6 = inlined_call_operand.hbm [shape: f32[2,2], index: 6, kind: output, shape index: {1}]
  %7 = xla_tuple %s5, %s6
  %s8 = sld [smem:[#allocation0]]
  $region46: #{tpu_custom_call.1} parent=0
    _
  %s10 = ssub.s32 1, %s8
  %s11 = scalar_select 0, %s10, %s8
  $region1: #{tpu_custom_call.1} parent=0
    #allocation4 [shape = 'u8[1024]{0}', space=vmem, size = 0x400, scoped, tag = 'output window, operand 0, single buffered']
    #allocation5 [shape = 's32[1]{0}', space=sflag, size = 0x4, scoped, tag = 'scoped memory for tpu_custom_call.1']
    #allocation6 [shape = 'u8[1024]{0}', space=vmem, size = 0x400, scoped, tag = 'output window, operand 1, single buffered']
    #allocation7 [shape = 's32[1]{0}', space=sflag, size = 0x4, scoped, tag = 'scoped memory for tpu_custom_call.1']
    %12 = vsyncpa [#allocation5], 0
    %13 = vsyncpa [#allocation7], 0
    // Predicated region
    $region2: #{tpu_custom_call.1} parent=1 // pred_check
      _
    $region3: #{tpu_custom_call.1} parent=1 // pred_check_branch
      %15 = sbr.rel (0) target = $region5
    $region4: #{tpu_custom_call.1} parent=1 // pred_region
      _
    $region5: #{tpu_custom_call.1} parent=1 // pred_fallthru
      _
    // Predicated region
    $region6: #{tpu_custom_call.1} parent=1 // pred_check
      _
    $region7: #{tpu_custom_call.1} parent=1 // pred_check_branch
      %17 = sbr.rel (0) target = $region9
    $region8: #{tpu_custom_call.1} parent=1 // pred_region
      _
    $region9: #{tpu_custom_call.1} parent=1 // pred_fallthru
      _
    // Predicated region
    $region10: #{tpu_custom_call.1} parent=1 // pred_check
      _
    $region11: #{tpu_custom_call.1} parent=1 // pred_check_branch
      %19 = sbr.rel (0) target = $region13
    $region12: #{tpu_custom_call.1} parent=1 // pred_region
      _
    $region13: #{tpu_custom_call.1} parent=1 // pred_fallthru
      _
    // Predicated region
    $region14: #{tpu_custom_call.1} parent=1 // pred_check
      _
    $region15: #{tpu_custom_call.1} parent=1 // pred_check_branch
      %21 = sbr.rel (0) target = $region17
    $region16: #{tpu_custom_call.1} parent=1 // pred_region
      _
    $region17: #{tpu_custom_call.1} parent=1 // pred_fallthru
      _
    // Predicated region
    $region18: #{tpu_custom_call.1} parent=1 // pred_check
      _
    $region19: #{tpu_custom_call.1} parent=1 // pred_check_branch
      %23 = sbr.rel (0) target = $region21
    $region20: #{tpu_custom_call.1} parent=1 // pred_region
      _
    $region21: #{tpu_custom_call.1} parent=1 // pred_fallthru
      _
    %p24 = scmp.eq.s32.totalorder 0, 0
    // Predicated region
    $region22: #{tpu_custom_call.1} parent=1 // pred_check
      %p25 = pneg %p24
    $region23: #{tpu_custom_call.1} parent=1 // pred_check_branch
      %27 = sbr.rel (%p25) target = $region25
    $region24: #{tpu_custom_call.1} parent=1 // pred_region
      %vm28 = vcmask 9216
      %29 = vst.msk [vmem:[#allocation2] sm:$0x3] %vm28, 0.0
      %30 = vst.msk [vmem:[#allocation3] sm:$0x3] %vm28, 0.0
    $region25: #{tpu_custom_call.1} parent=1 // pred_fallthru
      _
    %v31 = vlaneseq
    %v32 = vand.u32 %v31, 127
    %s33 = smul.u32 0, 8
    %v34 = vstv %s33
    %v35 = vadd.s32 %v32, %v34
    %vm36 = vcmp.lt.s32.totalorder %v35, 8
    %v37 = vld [vmem:[%s0] sm:$0x3]
    %s38 = scalar_lea.vmem %s0, 2
    %v39 = vld [vmem:[%s38] sm:$0x3]
    %vm40 = vcmp.gt.f32.partialorder %v39, %v37
    %v41 = vsel %vm40, %v39, %v37
    %v42 = vsel %vm40, 1, 0
    %s43 = scalar_lea.vmem %s0, 4
    %v44 = vld [vmem:[%s43] sm:$0x3]
    %vm45 = vcmp.gt.f32.partialorder %v44, %v41
    %v46 = vsel %vm45, %v44, %v41
    %v47 = vsel %vm45, 2, %v42
    %s48 = scalar_lea.vmem %s0, 6
    %v49 = vld [vmem:[%s48] sm:$0x3]
    %vm50 = vcmp.gt.f32.partialorder %v49, %v46
    %v51 = vsel %vm50, %v49, %v46
    %v52 = vsel %vm50, 3, %v47
    %s53 = scalar_lea.vmem %s0, 8
    %v54 = vld [vmem:[%s53] sm:$0x3]
    %vm55 = vcmp.gt.f32.partialorder %v54, %v51
    %v56 = vsel %vm55, %v54, %v51
    %v57 = vsel %vm55, 4, %v52
    %s58 = scalar_lea.vmem %s0, 10
    %v59 = vld [vmem:[%s58] sm:$0x3]
    %vm60 = vcmp.gt.f32.partialorder %v59, %v56
    %v61 = vsel %vm60, %v59, %v56
    %v62 = vsel %vm60, 5, %v57
    %s63 = scalar_lea.vmem %s0, 12
    %v64 = vld [vmem:[%s63] sm:$0x3]
    %vm65 = vcmp.gt.f32.partialorder %v64, %v61
    %v66 = vsel %vm65, %v64, %v61
    %v67 = vsel %vm65, 6, %v62
    %s68 = scalar_lea.vmem %s0, 14
    %v69 = vld [vmem:[%s68] sm:$0x3]
    %vm70 = vcmp.gt.f32.partialorder %v69, %v66
    %v71 = vsel %vm70, %v69, %v66
    %v72 = vsel %vm70, 7, %v67
    %v73 = vsub.f32 %v37, %v71
    %v74 = vmul.f32 %v73, 1.442695
    %v75 = vpow.pop %v74
    %v76 = vsub.f32 %v39, %v71
    %v77 = vmul.f32 %v76, 1.442695
    %v78 = vpow.pop %v77
    %v79 = vadd.f32 %v75, %v78
    %v80 = vsub.f32 %v44, %v71
    %v81 = vmul.f32 %v80, 1.442695
    %v82 = vpow.pop %v81
    %v83 = vadd.f32 %v79, %v82
    %v84 = vsub.f32 %v49, %v71
    %v85 = vmul.f32 %v84, 1.442695
    %v86 = vpow.pop %v85
    %v87 = vadd.f32 %v83, %v86
    %v88 = vsub.f32 %v54, %v71
    %v89 = vmul.f32 %v88, 1.442695
    %v90 = vpow.pop %v89
    %v91 = vadd.f32 %v87, %v90
    %v92 = vsub.f32 %v59, %v71
    %v93 = vmul.f32 %v92, 1.442695
    %v94 = vpow.pop %v93
    %v95 = vadd.f32 %v91, %v94
    %v96 = vsub.f32 %v64, %v71
    %v97 = vmul.f32 %v96, 1.442695
    %v98 = vpow.pop %v97
    %v99 = vadd.f32 %v95, %v98
    %v100 = vsub.f32 %v69, %v71
    %v101 = vmul.f32 %v100, 1.442695
    %v102 = vpow.pop %v101
    %v103 = vadd.f32 %v99, %v102
    %v104 = vlog2.pop %v103
    %v105 = vmul.f32 %v104, 0.6931472
    %v106 = vsub.f32 0.0, %v105
    %vm107 = vcmp.ne.s32.totalorder %v72, 7
    %vm108 = vmand %vm107, %vm36
    %v109 = vsel %vm108, %v106, 0.0
    %vm110 = vcmask 58368
    %v111 = vsel %vm110, %v109, 0.0
    %112 = vadd.xlane.f32.xlu0 %v111
    %v113 = vpop.xlane.xlu0 %112
    %v114 = vsel %vm108, 1, 0
    %v115 = vcvt.s32.f32 %v114
    %v116 = vsel %vm110, %v115, 0.0
    %117 = vadd.xlane.f32.xlu0 %v116
    %v118 = vpop.xlane.xlu0 %117
    %v119 = vld [vmem:[#allocation2] sm:$0x3]
    %v120 = vadd.f32 %v119, %v113
    %vm121 = vcmask 1024
    %122 = vst.msk [vmem:[#allocation2] sm:$0x3] %vm121, %v120
    %v123 = vld [vmem:[#allocation3] sm:$0x3]
    %v124 = vadd.f32 %v123, %v118
    %125 = vst.msk [vmem:[#allocation3] sm:$0x3] %vm121, %v124
    %s126 = scalar_lea.vmem %s0, 24
    %v127 = vld [vmem:[%s126] sm:$0x3]
    %s128 = scalar_lea.vmem %s0, 26
    %v129 = vld [vmem:[%s128] sm:$0x3]
    %vm130 = vcmp.gt.f32.partialorder %v129, %v127
    %v131 = vsel %vm130, %v129, %v127
    %v132 = vsel %vm130, 1, 0
    %s133 = scalar_lea.vmem %s0, 28
    %v134 = vld [vmem:[%s133] sm:$0x3]
    %vm135 = vcmp.gt.f32.partialorder %v134, %v131
    %v136 = vsel %vm135, %v134, %v131
    %v137 = vsel %vm135, 2, %v132
    %s138 = scalar_lea.vmem %s0, 30
    %v139 = vld [vmem:[%s138] sm:$0x3]
    %vm140 = vcmp.gt.f32.partialorder %v139, %v136
    %v141 = vsel %vm140, %v139, %v136
    %v142 = vsel %vm140, 3, %v137
    %s143 = scalar_lea.vmem %s0, 32
    %v144 = vld [vmem:[%s143] sm:$0x3]
    %vm145 = vcmp.gt.f32.partialorder %v144, %v141
    %v146 = vsel %vm145, %v144, %v141
    %v147 = vsel %vm145, 4, %v142
    %s148 = scalar_lea.vmem %s0, 34
    %v149 = vld [vmem:[%s148] sm:$0x3]
    %vm150 = vcmp.gt.f32.partialorder %v149, %v146
    %v151 = vsel %vm150, %v149, %v146
    %v152 = vsel %vm150, 5, %v147
    %s153 = scalar_lea.vmem %s0, 36
    %v154 = vld [vmem:[%s153] sm:$0x3]
    %vm155 = vcmp.gt.f32.partialorder %v154, %v151
    %v156 = vsel %vm155, %v154, %v151
    %v157 = vsel %vm155, 6, %v152
    %s158 = scalar_lea.vmem %s0, 38
    %v159 = vld [vmem:[%s158] sm:$0x3]
    %vm160 = vcmp.gt.f32.partialorder %v159, %v156
    %v161 = vsel %vm160, %v159, %v156
    %v162 = vsel %vm160, 7, %v157
    %s163 = scalar_lea.vmem %s0, 40
    %v164 = vld [vmem:[%s163] sm:$0x3]
    %vm165 = vcmp.gt.f32.partialorder %v164, %v161
    %v166 = vsel %vm165, %v164, %v161
    %v167 = vsel %vm165, 8, %v162
    %s168 = scalar_lea.vmem %s0, 42
    %v169 = vld [vmem:[%s168] sm:$0x3]
    %vm170 = vcmp.gt.f32.partialorder %v169, %v166
    %v171 = vsel %vm170, %v169, %v166
    %v172 = vsel %vm170, 9, %v167
    %s173 = scalar_lea.vmem %s0, 44
    %v174 = vld [vmem:[%s173] sm:$0x3]
    %vm175 = vcmp.gt.f32.partialorder %v174, %v171
    %v176 = vsel %vm175, %v174, %v171
    %v177 = vsel %vm175, 10, %v172
    %s178 = scalar_lea.vmem %s0, 46
    %v179 = vld [vmem:[%s178] sm:$0x3]
    %vm180 = vcmp.gt.f32.partialorder %v179, %v176
    %v181 = vsel %vm180, %v179, %v176
    %v182 = vsel %vm180, 11, %v177
    %v183 = vsub.f32 %v127, %v181
    %v184 = vmul.f32 %v183, 1.442695
    %v185 = vpow.pop %v184
    %v186 = vsub.f32 %v129, %v181
    %v187 = vmul.f32 %v186, 1.442695
    %v188 = vpow.pop %v187
    %v189 = vadd.f32 %v185, %v188
    %v190 = vsub.f32 %v134, %v181
    %v191 = vmul.f32 %v190, 1.442695
    %v192 = vpow.pop %v191
    %v193 = vadd.f32 %v189, %v192
    %v194 = vsub.f32 %v139, %v181
    %v195 = vmul.f32 %v194, 1.442695
    %v196 = vpow.pop %v195
    %v197 = vadd.f32 %v193, %v196
    %v198 = vsub.f32 %v144, %v181
    %v199 = vmul.f32 %v198, 1.442695
    %v200 = vpow.pop %v199
    %v201 = vadd.f32 %v197, %v200
    %v202 = vsub.f32 %v149, %v181
    %v203 = vmul.f32 %v202, 1.442695
    %v204 = vpow.pop %v203
    %v205 = vadd.f32 %v201, %v204
    %v206 = vsub.f32 %v154, %v181
    %v207 = vmul.f32 %v206, 1.442695
    %v208 = vpow.pop %v207
    %v209 = vadd.f32 %v205, %v208
    %v210 = vsub.f32 %v159, %v181
    %v211 = vmul.f32 %v210, 1.442695
    %v212 = vpow.pop %v211
    %v213 = vadd.f32 %v209, %v212
    %v214 = vsub.f32 %v164, %v181
    %v215 = vmul.f32 %v214, 1.442695
    %v216 = vpow.pop %v215
    %v217 = vadd.f32 %v213, %v216
    %v218 = vsub.f32 %v169, %v181
    %v219 = vmul.f32 %v218, 1.442695
    %v220 = vpow.pop %v219
    %v221 = vadd.f32 %v217, %v220
    %v222 = vsub.f32 %v174, %v181
    %v223 = vmul.f32 %v222, 1.442695
    %v224 = vpow.pop %v223
    %v225 = vadd.f32 %v221, %v224
    %v226 = vsub.f32 %v179, %v181
    %v227 = vmul.f32 %v226, 1.442695
    %v228 = vpow.pop %v227
    %v229 = vadd.f32 %v225, %v228
    %v230 = vlog2.pop %v229
    %v231 = vmul.f32 %v230, 0.6931472
    %v232 = vsub.f32 0.0, %v231
    %vm233 = vcmp.ne.s32.totalorder %v182, 11
    %vm234 = vmand %vm233, %vm36
    %v235 = vsel %vm234, %v232, 0.0
    %v236 = vsel %vm110, %v235, 0.0
    %237 = vadd.xlane.f32.xlu0 %v236
    %v238 = vpop.xlane.xlu0 %237
    %v239 = vsel %vm234, 1, 0
    %v240 = vcvt.s32.f32 %v239
    %v241 = vsel %vm110, %v240, 0.0
    %242 = vadd.xlane.f32.xlu0 %v241
    %v243 = vpop.xlane.xlu0 %242
    %v244 = vld [vmem:[#allocation2] sm:$0x3]
    %v245 = vadd.f32 %v244, %v238
    %vm246 = vcmask 9224
    %247 = vst.msk [vmem:[#allocation2] sm:$0x3] %vm246, %v245
    %v248 = vld [vmem:[#allocation3] sm:$0x3]
    %v249 = vadd.f32 %v248, %v243
    %250 = vst.msk [vmem:[#allocation3] sm:$0x3] %vm246, %v249
    // Predicated region
    $region26: #{tpu_custom_call.1} parent=1 // pred_check
      %p251 = pneg %p24
    $region27: #{tpu_custom_call.1} parent=1 // pred_check_branch
      %253 = sbr.rel (%p251) target = $region29
    $region28: #{tpu_custom_call.1} parent=1 // pred_region
      %vm254 = vcmask 9216
      %255 = vst.msk [vmem:[#allocation4] sm:$0x3] %vm254, 0.0
      %v256 = vld [vmem:[#allocation3] sm:$0x3]
      %v257 = vmul.f32 %v256, 1.9459101
      %v258 = vadd.f32 %v257, 1e-05
      %v259 = vld [vmem:[#allocation2] sm:$0x3]
      %v260 = vrcp.pop %v258
      %v261 = vmul.f32 %v259, %v260
      %262 = vst.msk [vmem:[#allocation4] sm:$0x3] %vm121, %v261
      %v263 = vld [vmem:[#allocation3] sm:$0x3]
      %v264 = vmul.f32 %v263, 2.3978953
      %v265 = vadd.f32 %v264, 1e-05
      %v266 = vld [vmem:[#allocation2] sm:$0x3]
      %v267 = vrcp.pop %v265
      %v268 = vmul.f32 %v266, %v267
      %269 = vst.msk [vmem:[#allocation4] sm:$0x3] %vm246, %v268
      %v270 = vld [vmem:[#allocation4] sm:$0x3]
      %v271 = vld [vmem:[%s1] sm:$0x3]
      %v272 = vld [vmem:[%s2] sm:$0x1]
      %v274 = vlaneseq
      %v275 = vshrl.u32 %v274, 7
      %v276 = vsub.s32 0, %v275
      %v277 = vrot.slane %v272, %v276
      %vm279 = vcmask 15360
      %v281 = vsel %vm279, %v270, 0
      %vm283 = vcmask 1041408
      %v285 = vsel %vm283, %v271, 0
      %287 = vmatprep.subr.mxu0 0.0
      %288 = vmatpush1.msra.mxu0 %v285
      %289 = vmatprep.subr.mxu0 0.0
      %290 = vmatpush1.msra.mxu0 0.0
      %291 = vmatprep.subr.mxu0 0.0
      %292 = vmatpush1.msra.mxu0 0.0
      %293 = vmatprep.subr.mxu0 0.0
      %294 = vmatpush1.msra.mxu0 0.0
      %295 = vmatprep.subr.mxu0 0.0
      %296 = vmatpush1.msra.mxu0 0.0
      %297 = vmatprep.subr.mxu0 0.0
      %298 = vmatpush1.msra.mxu0 0.0
      %299 = vmatprep.subr.mxu0 0.0
      %300 = vmatpush1.msra.mxu0 0.0
      %301 = vmatprep.subr.mxu0 0.0
      %302 = vmatpush1.msra.mxu0 0.0
      %303 = vmatprep.subr.mxu0 0.0
      %304 = vmatpush1.msra.mxu0 0.0
      %305 = vmatprep.subr.mxu0 0.0
      %306 = vmatpush1.msra.mxu0 0.0
      %307 = vmatprep.subr.mxu0 0.0
      %308 = vmatpush1.msra.mxu0 0.0
      %309 = vmatprep.subr.mxu0 0.0
      %310 = vmatpush1.msra.mxu0 0.0
      %311 = vmatprep.subr.mxu0 0.0
      %312 = vmatpush1.msra.mxu0 0.0
      %313 = vmatprep.subr.mxu0 0.0
      %314 = vmatpush1.msra.mxu0 0.0
      %315 = vmatprep.subr.mxu0 0.0
      %316 = vmatpush1.msra.mxu0 0.0
      %317 = vmatprep.subr.mxu0 0.0
      %318 = vmatpush1.msra.mxu0 0.0
      %319 = vmatprep.subr.mxu0 0.0
      %320 = vmatpush1.msra.mxu0 0.0
      %321 = vmatprep.subr.mxu0 0.0
      %322 = vmatpush1.msra.mxu0 0.0
      %323 = vmatprep.subr.mxu0 0.0
      %324 = vmatpush1.msra.mxu0 0.0
      %325 = vmatprep.subr.mxu0 0.0
      %326 = vmatpush1.msra.mxu0 0.0
      %327 = vmatprep.subr.mxu0 0.0
      %328 = vmatpush1.msra.mxu0 0.0
      %329 = vmatprep.subr.mxu0 0.0
      %330 = vmatpush1.msra.mxu0 0.0
      %331 = vmatprep.subr.mxu0 0.0
      %332 = vmatpush1.msra.mxu0 0.0
      %333 = vmatprep.subr.mxu0 0.0
      %334 = vmatpush1.msra.mxu0 0.0
      %335 = vmatprep.subr.mxu0 0.0
      %336 = vmatpush1.msra.mxu0 0.0
      %337 = vmatprep.subr.mxu0 0.0
      %338 = vmatpush1.msra.mxu0 0.0
      %339 = vmatprep.subr.mxu0 0.0
      %340 = vmatpush1.msra.mxu0 0.0
      %341 = vmatprep.subr.mxu0 0.0
      %342 = vmatpush1.msra.mxu0 0.0
      %343 = vmatprep.subr.mxu0 0.0
      %344 = vmatpush1.msra.mxu0 0.0
      %345 = vmatprep.subr.mxu0 0.0
      %346 = vmatpush1.msra.mxu0 0.0
      %347 = vmatprep.subr.mxu0 0.0
      %348 = vmatpush1.msra.mxu0 0.0
      %349 = vmatprep.subr.mxu0 0.0
      %350 = vmatpush1.msra.mxu0 0.0
      %351 = vmatprep.mubr.f32.mxu0 0.0
      %352 = vmatmul.mubr.f32.gmra.mrb[0].mxu0 %v281
      %v353 = vpop.f32.mrb[0].mxu0
      %v354 = vadd.f32 %v277, %v353
      %v355 = vpop.f32.mrb[0].mxu0
      %356 = vdwg.mxu0
      %v357 = vmax.f32 %v354, 0.0
      %v358 = vld [vmem:[%s3] sm:$0xff]
      %v359 = vld [vmem:[%s3 + $0x8] sm:$0xff]
      %v360 = vld [vmem:[%s3 + $0x10] sm:$0xff]
      %v361 = vld [vmem:[%s3 + $0x18] sm:$0xff]
      %v362 = vld [vmem:[%s4] sm:$0x1]
      %v364 = vlaneseq
      %v365 = vshrl.u32 %v364, 7
      %v366 = vsub.s32 0, %v365
      %v367 = vrot.slane %v362, %v366
      %vm369 = vcmask 261120
      %v371 = vsel %vm369, %v357, 0
      %373 = vmatprep.subr.mxu0 0.0
      %374 = vmatpush1.msra.mxu0 %v358
      %375 = vmatprep.subr.mxu0 0.0
      %376 = vmatpush1.msra.mxu0 %v359
      %377 = vmatprep.subr.mxu0 0.0
      %378 = vmatpush1.msra.mxu0 %v360
      %379 = vmatprep.subr.mxu0 0.0
      %380 = vmatpush1.msra.mxu0 %v361
      %381 = vmatprep.subr.mxu0 0.0
      %382 = vmatpush1.msra.mxu0 0.0
      %383 = vmatprep.subr.mxu0 0.0
      %384 = vmatpush1.msra.mxu0 0.0
      %385 = vmatprep.subr.mxu0 0.0
      %386 = vmatpush1.msra.mxu0 0.0
      %387 = vmatprep.subr.mxu0 0.0
      %388 = vmatpush1.msra.mxu0 0.0
      %389 = vmatprep.subr.mxu0 0.0
      %390 = vmatpush1.msra.mxu0 0.0
      %391 = vmatprep.subr.mxu0 0.0
      %392 = vmatpush1.msra.mxu0 0.0
      %393 = vmatprep.subr.mxu0 0.0
      %394 = vmatpush1.msra.mxu0 0.0
      %395 = vmatprep.subr.mxu0 0.0
      %396 = vmatpush1.msra.mxu0 0.0
      %397 = vmatprep.subr.mxu0 0.0
      %398 = vmatpush1.msra.mxu0 0.0
      %399 = vmatprep.subr.mxu0 0.0
      %400 = vmatpush1.msra.mxu0 0.0
      %401 = vmatprep.subr.mxu0 0.0
      %402 = vmatpush1.msra.mxu0 0.0
      %403 = vmatprep.subr.mxu0 0.0
      %404 = vmatpush1.msra.mxu0 0.0
      %405 = vmatprep.subr.mxu0 0.0
      %406 = vmatpush1.msra.mxu0 0.0
      %407 = vmatprep.subr.mxu0 0.0
      %408 = vmatpush1.msra.mxu0 0.0
      %409 = vmatprep.subr.mxu0 0.0
      %410 = vmatpush1.msra.mxu0 0.0
      %411 = vmatprep.subr.mxu0 0.0
      %412 = vmatpush1.msra.mxu0 0.0
      %413 = vmatprep.subr.mxu0 0.0
      %414 = vmatpush1.msra.mxu0 0.0
      %415 = vmatprep.subr.mxu0 0.0
      %416 = vmatpush1.msra.mxu0 0.0
      %417 = vmatprep.subr.mxu0 0.0
      %418 = vmatpush1.msra.mxu0 0.0
      %419 = vmatprep.subr.mxu0 0.0
      %420 = vmatpush1.msra.mxu0 0.0
      %421 = vmatprep.subr.mxu0 0.0
      %422 = vmatpush1.msra.mxu0 0.0
      %423 = vmatprep.subr.mxu0 0.0
      %424 = vmatpush1.msra.mxu0 0.0
      %425 = vmatprep.subr.mxu0 0.0
      %426 = vmatpush1.msra.mxu0 0.0
      %427 = vmatprep.subr.mxu0 0.0
      %428 = vmatpush1.msra.mxu0 0.0
      %429 = vmatprep.subr.mxu0 0.0
      %430 = vmatpush1.msra.mxu0 0.0
      %431 = vmatprep.subr.mxu0 0.0
      %432 = vmatpush1.msra.mxu0 0.0
      %433 = vmatprep.subr.mxu0 0.0
      %434 = vmatpush1.msra.mxu0 0.0
      %435 = vmatprep.subr.mxu0 0.0
      %436 = vmatpush1.msra.mxu0 0.0
      %437 = vmatprep.mubr.f32.mxu0 0.0
      %438 = vmatmul.mubr.f32.gmra.mrb[0].mxu0 %v371
      %v439 = vpop.f32.mrb[0].mxu0
      %v440 = vadd.f32 %v367, %v439
      %v441 = vpop.f32.mrb[0].mxu0
      %442 = vdwg.mxu0
      %443 = vst.msk [vmem:[#allocation6] sm:$0x3] %vm254, %v440
    $region29: #{tpu_custom_call.1} parent=1 // pred_fallthru
      _
    // Predicated region
    $region30: #{tpu_custom_call.1} parent=1 // pred_check
      _
    $region31: #{tpu_custom_call.1} parent=1 // pred_check_branch
      %445 = sbr.rel (0) target = $region33
    $region32: #{tpu_custom_call.1} parent=1 // pred_region
      %s447 = ssub.s32 32, 32
      %448 = vsyncadd [#allocation5], %s447
      %s450 = sshll.u32 [#allocation4], 4
      %s451 = int_to_ptr.vmem [resolvable:$true] %s450
      %453 = dma.vmem_to_hbm [thread:$0]  %s451, 32, %s5, [#allocation5]
    $region33: #{tpu_custom_call.1} parent=1 // pred_fallthru
      _
    // Predicated region
    $region34: #{tpu_custom_call.1} parent=1 // pred_check
      _
    $region35: #{tpu_custom_call.1} parent=1 // pred_check_branch
      %455 = sbr.rel (0) target = $region37
    $region36: #{tpu_custom_call.1} parent=1 // pred_region
      %s457 = ssub.s32 32, 32
      %458 = vsyncadd [#allocation7], %s457
      %s460 = sshll.u32 [#allocation6], 4
      %s461 = int_to_ptr.vmem [resolvable:$true] %s460
      %463 = dma.vmem_to_hbm [thread:$0]  %s461, 32, %s6, [#allocation7]
    $region37: #{tpu_custom_call.1} parent=1 // pred_fallthru
      _
    // Predicated region
    $region38: #{tpu_custom_call.1} parent=1 // pred_check
      _
    $region39: #{tpu_custom_call.1} parent=1 // pred_check_branch
      %465 = sbr.rel (0) target = $region41
    $region40: #{tpu_custom_call.1} parent=1 // pred_region
      %466 = dma.done [#allocation5], 32
    $region41: #{tpu_custom_call.1} parent=1 // pred_fallthru
      _
    // Predicated region
    $region42: #{tpu_custom_call.1} parent=1 // pred_check
      _
    $region43: #{tpu_custom_call.1} parent=1 // pred_check_branch
      %468 = sbr.rel (0) target = $region45
    $region44: #{tpu_custom_call.1} parent=1 // pred_region
      %469 = dma.done [#allocation7], 32
    $region45: #{tpu_custom_call.1} parent=1 // pred_fallthru
      _
    %470 = vsyncpa [#allocation5], 1
    %471 = vsyncpa [#allocation7], 1

</llo_original>
